<compile_context>
chip_gen: v5e
topology: v5e:2x2
jax: 0.10.0
libtpu: 0.0.40
codegen_flags: <defaults>
</compile_context>

<pallas_src>
import jax
import jax.numpy as jnp
from jax.experimental import pallas as pl
from jax.experimental.pallas import tpu as pltpu


_TILE_BYTE_BUDGET = 2 * 1024 * 1024   # ~2 MiB per embed tile buffer
_SUBLANE = 32                         # multiple satisfying f32(8)/bf16(16)/int8(32)


def _avg_pad_kernel(embed_ref, mask_ref, pad_row_ref, out_ref):
    # embed_ref:   (TB, D)  input embedding tile
    # mask_ref:    (TB, 1)  int8 mask column (1 where the row must be padded)
    # pad_row_ref: (1, D)   pad-embedding row for `domain` (resident across tiles)
    sel = mask_ref[...] != 0                                   # (TB, 1) bool
    out_ref[...] = jnp.where(sel, pad_row_ref[...], embed_ref[...])


def _round_up(x, m):
    return (x + m - 1) // m * m


def avg_pad_forward(domain_embed, domain, domain_mask, pad_weight,
                    *, donate_input=False):
    """Functional equivalent of avg_pad.forward.

    domain_embed: (B, D) float array
    domain:       Python int in [0, n_domain)
    domain_mask:  (B, n_domain) int array, or None
    pad_weight:   (n_domain, D) float array (nn.Embedding weight)
    donate_input: alias the output onto domain_embed (caller must donate it)
    """
    if domain_mask is None:
        return domain_embed

    domain = int(domain)
    B, D = domain_embed.shape
    dsize = jnp.dtype(domain_embed.dtype).itemsize

    # ---- batch tile size ------------------------------------------------------
    if B <= _SUBLANE:
        # One full-extent block: always a legal block shape for any dtype.
        TB = B
    else:
        row_bytes = max(D, 1) * dsize
        budget_rows = max(_SUBLANE,
                          (_TILE_BYTE_BUDGET // row_bytes) // _SUBLANE * _SUBLANE)
        # Aim for ~8 tiles so the DMA pipeline and both v7x TCs have work.
        target_rows = max(_SUBLANE, _round_up(pl.cdiv(B, 8), _SUBLANE))
        TB = min(budget_rows, target_rows, (B // _SUBLANE) * _SUBLANE)
    grid_b = pl.cdiv(B, TB)

    # ---- small wrapper-side prep (all over tiny arrays) -----------------------
    # Mask column as contiguous (B, 1) int8: matches PyTorch's `== 1` test.
    mask_col = (jax.lax.slice(domain_mask, (0, domain), (B, domain + 1)) == 1)
    mask_col = mask_col.astype(jnp.int8)

    # Single pad-embedding row, resident in VMEM across every batch tile.
    pad_row = jax.lax.slice(pad_weight, (domain, 0), (domain + 1, D))
    pad_row = pad_row.astype(domain_embed.dtype)

    # ---- explicit VMEM budget (keeps v5e's 16 MiB default safe) ---------------
    lane_d = _round_up(D, 128)
    embed_tile = TB * lane_d * dsize                # per buffer
    mask_tile = max(TB, _SUBLANE) * 128             # int8, lane-padded
    pad_tile = _SUBLANE * lane_d * dsize
    footprint = 2 * (2 * embed_tile + mask_tile + pad_tile)   # double-buffered
    vmem_limit = int(min(max(2 * footprint, 16 * 1024 * 1024), 64 * 1024 * 1024))

    call_kwargs = {}
    if donate_input:
        call_kwargs["input_output_aliases"] = {0: 0}   # domain_embed -> output

    out = pl.pallas_call(
        _avg_pad_kernel,
        out_shape=jax.ShapeDtypeStruct((B, D), domain_embed.dtype),
        grid=(grid_b,),
        in_specs=[
            pl.BlockSpec((TB, D), lambda i: (i, 0)),    # domain_embed tile
            pl.BlockSpec((TB, 1), lambda i: (i, 0)),    # int8 mask column tile
            pl.BlockSpec((1, D), lambda i: (0, 0)),     # pad row (resident)
        ],
        out_specs=pl.BlockSpec((TB, D), lambda i: (i, 0)),
        compiler_params=pltpu.CompilerParams(
            dimension_semantics=("parallel",),          # shard tiles across TCs on v7x
            vmem_limit_bytes=vmem_limit,
        ),
        **call_kwargs,
    )(domain_embed, mask_col, pad_row)
    return out


def _reference(domain_embed, domain, domain_mask, pad_weight):
    sel = (domain_mask[:, domain] == 1)[:, None]
    return jnp.where(sel, pad_weight[domain][None, :], domain_embed)


if __name__ == "__main__":
    N_DOMAIN = 4
    DOMAIN = 2
    D = 128

    key = jax.random.PRNGKey(0)
    k_pad, k_e1, k_m1, k_e2, k_m2, k_e3, k_m3 = jax.random.split(key, 7)

    # deterministic "nn.init.normal_(weight, std=0.01)"
    pad_weight = 0.01 * jax.random.normal(k_pad, (N_DOMAIN, D), dtype=jnp.float32)

    # Case 1: small batch (single full-extent block).
    B1 = 16
    e1 = jax.random.normal(k_e1, (B1, D), dtype=jnp.float32)
    m1 = jax.random.bernoulli(k_m1, p=0.5, shape=(B1, N_DOMAIN)).astype(jnp.int32)
    o1 = jax.block_until_ready(avg_pad_forward(e1, DOMAIN, m1, pad_weight))
    assert jnp.allclose(o1, _reference(e1, DOMAIN, m1, pad_weight)), "mismatch B=16"

    # Case 2: ragged tiny batch (full-extent block, odd row count).
    B2 = 13
    e2 = jax.random.normal(k_e2, (B2, D), dtype=jnp.float32)
    m2 = jax.random.bernoulli(k_m2, p=0.5, shape=(B2, N_DOMAIN)).astype(jnp.int32)
    o2 = jax.block_until_ready(avg_pad_forward(e2, DOMAIN, m2, pad_weight))
    assert jnp.allclose(o2, _reference(e2, DOMAIN, m2, pad_weight)), "mismatch B=13"

    # Case 3: multi-tile grid with a partial tail block (no jnp.pad path).
    B3 = 100
    e3 = jax.random.normal(k_e3, (B3, D), dtype=jnp.float32)
    m3 = jax.random.bernoulli(k_m3, p=0.5, shape=(B3, N_DOMAIN)).astype(jnp.int32)
    o3 = jax.block_until_ready(avg_pad_forward(e3, DOMAIN, m3, pad_weight))
    assert jnp.allclose(o3, _reference(e3, DOMAIN, m3, pad_weight)), "mismatch B=100"

    # Case 4: domain_mask=None path (identity).
    o4 = avg_pad_forward(e1, DOMAIN, None, pad_weight)
    assert jnp.allclose(o4, e1)

    print("KERNEL_OK")
</pallas_src>

<mosaic_0001>
module attributes {stable_mosaic.version = 11 : i64} {
  func.func @_avg_pad_kernel(%arg0: i32, %arg1: memref<16x128xf32, #tpu.memory_space<vmem>>, %arg2: memref<16x1xi8, #tpu.memory_space<vmem>>, %arg3: memref<1x128xf32, #tpu.memory_space<vmem>>, %arg4: memref<16x128xf32, #tpu.memory_space<vmem>>) attributes {dimension_semantics = [#tpu.dimension_semantics<parallel>], iteration_bounds = array<i64: 1>, scalar_prefetch = 0 : i64, scratch_operands = 0 : i64, tpu.core_type = #tpu.core_type<tc>, window_params = [{transform_indices = @transform_0, window_bounds = array<i64: 16, 128>}, {transform_indices = @transform_1, window_bounds = array<i64: 16, 1>}, {pipeline_mode = #tpu.pipeline_mode<synchronous>, transform_indices = @transform_2, window_bounds = array<i64: 1, 128>}, {transform_indices = @transform_3, window_bounds = array<i64: 16, 128>}]} {
    %c0 = arith.constant 0 : index
    %c0_0 = arith.constant 0 : index
    %0 = vector.load %arg2[%c0, %c0_0] : memref<16x1xi8, #tpu.memory_space<vmem>>, vector<16x1xi8>
    %c0_i8 = arith.constant 0 : i8
    %1 = vector.broadcast %c0_i8 : i8 to vector<16x1xi8>
    %2 = arith.cmpi ne, %0, %1 : vector<16x1xi8>
    %c0_1 = arith.constant 0 : index
    %c0_2 = arith.constant 0 : index
    %3 = vector.load %arg3[%c0_1, %c0_2] : memref<1x128xf32, #tpu.memory_space<vmem>>, vector<1x128xf32>
    %c0_3 = arith.constant 0 : index
    %c0_4 = arith.constant 0 : index
    %4 = vector.load %arg1[%c0_3, %c0_4] : memref<16x128xf32, #tpu.memory_space<vmem>>, vector<16x128xf32>
    %5 = vector.shape_cast %2 : vector<16x1xi1> to vector<16x1xi1>
    %6 = vector.broadcast %5 : vector<16x1xi1> to vector<16x128xi1>
    %7 = vector.shape_cast %3 : vector<1x128xf32> to vector<1x128xf32>
    %8 = vector.broadcast %7 : vector<1x128xf32> to vector<16x128xf32>
    %9 = arith.select %6, %8, %4 : vector<16x128xi1>, vector<16x128xf32>
    %c0_5 = arith.constant 0 : index
    %c0_6 = arith.constant 0 : index
    %10 = vector.load %arg4[%c0_5, %c0_6] : memref<16x128xf32, #tpu.memory_space<vmem>>, vector<16x128xf32>
    tpu.vector_store %arg4[%c0_5, %c0_6], %9 {strides = array<i32>} : memref<16x128xf32, #tpu.memory_space<vmem>>, vector<16x128xf32>,
    return
  }
  func.func @transform_0(%arg0: i32) -> (i32, i32) {
    %c0_i32 = arith.constant 0 : i32
    %c0_i32_0 = arith.constant 0 : i32
    return %arg0, %c0_i32 : i32, i32
  }
  func.func @transform_1(%arg0: i32) -> (i32, i32) {
    %c0_i32 = arith.constant 0 : i32
    %c0_i32_0 = arith.constant 0 : i32
    return %arg0, %c0_i32 : i32, i32
  }
  func.func @transform_2(%arg0: i32) -> (i32, i32) {
    %c0_i32 = arith.constant 0 : i32
    %c0_i32_0 = arith.constant 0 : i32
    %c0_i32_1 = arith.constant 0 : i32
    return %c0_i32, %c0_i32_0 : i32, i32
  }
  func.func @transform_3(%arg0: i32) -> (i32, i32) {
    %c0_i32 = arith.constant 0 : i32
    %c0_i32_0 = arith.constant 0 : i32
    return %arg0, %c0_i32 : i32, i32
  }
}

</mosaic_0001>

<llo_original>
// kernel: tpu_custom_call.1
$region0: #{tpu_custom_call.1}
  #allocation0 [shape = 'u32[]', space=smem, size = 0x4, offset = 0x4, fixed_abs, tag = 'smem constant byte address 0x4 - core index']
  #allocation1 [shape = 'u32[72,128]{1,0:T(1,128)}', space=vmem, size = 0x9000, scoped, tag = 'internal scratch']
  %s0 = inlined_call_operand.hbm [shape: f32[16,128], index: 0, kind: input, shape index: {}]
  %s1 = inlined_call_operand.vmem [shape: s8[16,1], index: 1, kind: input, shape index: {}]
  %s2 = inlined_call_operand.vmem [shape: f32[1,128], index: 2, kind: input, shape index: {}]
  %s3 = inlined_call_operand.hbm [shape: f32[16,128], index: 3, kind: output, shape index: {}]
  %s4 = sld [smem:[#allocation0]]
  $region26: #{tpu_custom_call.1} parent=0
    _
  %s6 = ssub.s32 1, %s4
  %s7 = scalar_select 0, %s6, %s4
  $region1: #{tpu_custom_call.1} parent=0
    #allocation2 [shape = 'u8[8192]{0}', space=vmem, size = 0x2000, scoped, tag = 'input window, operand 0, single buffered']
    #allocation3 [shape = 's32[1]{0}', space=sflag, size = 0x4, scoped, tag = 'scoped memory for tpu_custom_call.1']
    #allocation4 [shape = 's32[1]{0}', space=sflag, size = 0x4, scoped, tag = 'scoped memory for tpu_custom_call.1']
    #allocation5 [shape = 'u8[8192]{0}', space=vmem, size = 0x2000, scoped, tag = 'output window, operand 0, single buffered']
    %8 = vsyncpa [#allocation3], 0
    %9 = vsyncpa [#allocation4], 0
    // Predicated region
    $region2: #{tpu_custom_call.1} parent=1 // pred_check
      _
    $region3: #{tpu_custom_call.1} parent=1 // pred_check_branch
      %11 = sbr.rel (0) target = $region5
    $region4: #{tpu_custom_call.1} parent=1 // pred_region
      %13 = vsyncadd [#allocation3], 0
      %s14 = sshll.u32 %s0, 4
      %s15 = int_to_ptr.hbm [resolvable:$true] %s14
      %s16 = sshll.u32 [#allocation2], 4
      %s17 = int_to_ptr.vmem [resolvable:$true] %s16
      %22 = dma.hbm_to_vmem [thread:$0]  %s15, 256, %s17, [#allocation3], 128, 128, 8
    $region5: #{tpu_custom_call.1} parent=1 // pred_fallthru
      _
    // Predicated region
    $region6: #{tpu_custom_call.1} parent=1 // pred_check
      _
    $region7: #{tpu_custom_call.1} parent=1 // pred_check_branch
      %24 = sbr.rel (0) target = $region9
    $region8: #{tpu_custom_call.1} parent=1 // pred_region
      _
    $region9: #{tpu_custom_call.1} parent=1 // pred_fallthru
      _
    // Predicated region
    $region10: #{tpu_custom_call.1} parent=1 // pred_check
      _
    $region11: #{tpu_custom_call.1} parent=1 // pred_check_branch
      %26 = sbr.rel (0) target = $region13
    $region12: #{tpu_custom_call.1} parent=1 // pred_region
      _
    $region13: #{tpu_custom_call.1} parent=1 // pred_fallthru
      _
    // Predicated region
    $region14: #{tpu_custom_call.1} parent=1 // pred_check
      _
    $region15: #{tpu_custom_call.1} parent=1 // pred_check_branch
      %28 = sbr.rel (0) target = $region17
    $region16: #{tpu_custom_call.1} parent=1 // pred_region
      %30 = dma.done [#allocation3], 256
    $region17: #{tpu_custom_call.1} parent=1 // pred_fallthru
      _
    %v33 = vld [vmem:[%s1] sm:$0x3]
    %v34 = vld [vmem:[%s1 + $0x2] sm:$0x3]
    %vm35 = vnez %v33
    %vm36 = vnez %v34
    %v37 = vld [vmem:[%s2] sm:$0x1]
    %v38 = vld [vmem:[#allocation2] sm:$0xff]
    %v39 = vld [vmem:[#allocation2 + $0x8] sm:$0xff]
    %v40 = vsel %vm35, 16843009, 0
    %v41 = vsel %vm36, 16843009, 0
    %v42 = vunpack.c.0.s8 %v40
    %v43 = vunpack.c.0.s8 %v41
    %vm44 = vcmp.ne.s32.totalorder %v42, 0
    %vm45 = vcmp.ne.s32.totalorder %v43, 0
    %v46 = vsel %vm44, 1, 0
    %v47 = vsel %vm45, 1, 0
    %48 = vset.pattern.permute.xlu0 0
    %49 = vperm.xlu0 %48, %v46
    %v50 = vpop.permute.xlu0 %49
    %51 = vset.pattern.permute.xlu0 0
    %52 = vperm.xlu0 %51, %v47
    %v53 = vpop.permute.xlu0 %52
    %vm54 = vcmp.eq.s32.totalorder %v50, 1
    %vm55 = vcmp.eq.s32.totalorder %v53, 1
    %v57 = vperm.slane %v37, 0
    %v59 = vsel %vm54, %v57, %v38
    %v60 = vsel %vm55, %v57, %v39
    %61 = vst [vmem:[#allocation5] sm:$0xff] %v59
    %62 = vst [vmem:[#allocation5 + $0x8] sm:$0xff] %v60
    // Predicated region
    $region18: #{tpu_custom_call.1} parent=1 // pred_check
      _
    $region19: #{tpu_custom_call.1} parent=1 // pred_check_branch
      %64 = sbr.rel (0) target = $region21
    $region20: #{tpu_custom_call.1} parent=1 // pred_region
      %66 = vsyncadd [#allocation4], 0
      %s67 = sshll.u32 [#allocation5], 4
      %s68 = int_to_ptr.vmem [resolvable:$true] %s67
      %s69 = sshll.u32 %s3, 4
      %s70 = int_to_ptr.hbm [resolvable:$true] %s69
      %75 = dma.vmem_to_hbm [thread:$0]  %s68, 256, %s70, [#allocation4], 128, 128, 8
    $region21: #{tpu_custom_call.1} parent=1 // pred_fallthru
      _
    // Predicated region
    $region22: #{tpu_custom_call.1} parent=1 // pred_check
      _
    $region23: #{tpu_custom_call.1} parent=1 // pred_check_branch
      %77 = sbr.rel (0) target = $region25
    $region24: #{tpu_custom_call.1} parent=1 // pred_region
      %79 = dma.done [#allocation4], 256
    $region25: #{tpu_custom_call.1} parent=1 // pred_fallthru
      _
    %80 = vsyncpa [#allocation3], 1
    %81 = vsyncpa [#allocation4], 1

</llo_original>
